<compile_context>
chip_gen: v7x
topology: tpu7x:2x2x1
jax: 0.10.0
libtpu: 0.0.40
codegen_flags: <defaults>
</compile_context>

<pallas_src>
import jax
import jax.numpy as jnp
from jax.experimental import pallas as pl
from jax.experimental.pallas import tpu as pltpu


def _attention_kernel(g_ref, x_ref, wgt_ref, wxt_ref, b_ref, wpsi_ref,
                      bpsi_ref, out_ref):
    # g_ref:   (F_g, tm)      x_ref:   (F_l, tm)    lane axis = flattened H*W
    # wgt_ref: (F_int, F_g)   wxt_ref: (F_int, F_l) BN-folded 1x1-conv weights
    # b_ref:   (F_int, 1)     fused bias (bg + bx, BN folded)
    # wpsi_ref:(F_int, 1)     bpsi_ref: (1, 1) scalar in SMEM
    # All elementwise math in f32 (v5e has no bf16 VPU/EUP); only the HBM
    # streams use the caller's dtype.
    gf = g_ref[...].astype(jnp.float32)
    xf = x_ref[...].astype(jnp.float32)
    g1 = jnp.dot(wgt_ref[...], gf, preferred_element_type=jnp.float32)
    x1 = jnp.dot(wxt_ref[...], xf, preferred_element_type=jnp.float32)
    s = jnp.maximum(g1 + x1 + b_ref[...], 0.0)               # ReLU, (F_int, tm)
    # psi 1x1 conv (F_int -> 1): sublane reduction (XLU slot, VALU stays free).
    t = jnp.sum(s * wpsi_ref[...], axis=0, keepdims=True) + bpsi_ref[0, 0]
    psi = jax.nn.sigmoid(t)                                   # (1, tm)
    # Ragged last tile: padded lanes carry garbage through exp/sigmoid --
    # benign; Pallas masks the out-of-bounds lanes on writeback.
    out_ref[...] = (xf * psi).astype(out_ref.dtype)


def _fold_conv_bn(w, b, gamma, beta, mean, var, eps=1e-5):
    """Fold inference-mode BatchNorm into a preceding 1x1 conv.

    w: (C_in, C_out), b/gamma/beta/mean/var: (C_out,)
    """
    scale = gamma / jnp.sqrt(var + eps)
    w_eff = w * scale[None, :]
    b_eff = (b - mean) * scale + beta
    return w_eff, b_eff


def _round_up(x, m):
    return ((x + m - 1) // m) * m


def attention_block(g, x, params, *, tm=8192, eps=1e-5):
    """g: (N, F_g, H, W), x: (N, F_l, H, W)  ->  (N, F_l, H, W) in x.dtype."""
    N, F_g, H, W = g.shape
    Nx, F_l, Hx, Wx = x.shape
    assert (N, H, W) == (Nx, Hx, Wx), "g and x must share batch/spatial dims"
    F_int = params["wg"].shape[1]
    HW = H * W

    # Free, contiguous reshapes -- no transpose / extra HBM passes.
    g3 = g.reshape(N, F_g, HW)
    x3 = x.reshape(N, F_l, HW)

    # Fold eval-mode BN into the 1x1 convs; fuse the two conv biases.
    wg, bg = _fold_conv_bn(params["wg"], params["bg"], params["bn_g_gamma"],
                           params["bn_g_beta"], params["bn_g_mean"],
                           params["bn_g_var"], eps)
    wx, bx = _fold_conv_bn(params["wx"], params["bx"], params["bn_x_gamma"],
                           params["bn_x_beta"], params["bn_x_mean"],
                           params["bn_x_var"], eps)
    wpsi, bpsi = _fold_conv_bn(params["wpsi"], params["bpsi"],
                               params["bn_p_gamma"], params["bn_p_beta"],
                               params["bn_p_mean"], params["bn_p_var"], eps)

    wgt = wg.T.astype(jnp.float32)                       # (F_int, F_g)
    wxt = wx.T.astype(jnp.float32)                       # (F_int, F_l)
    b_gx = (bg + bx).reshape(F_int, 1).astype(jnp.float32)
    wpsi_col = wpsi.reshape(F_int, 1).astype(jnp.float32)
    bpsi_arr = bpsi.reshape(1, 1).astype(jnp.float32)

    # Tile only the (large) spatial/lane axis; one image per step along the
    # batch axis.  No host-side padding: pl.cdiv + masked writeback handle a
    # ragged last block.
    # TODO(synk): for very small H*W with tiny channel counts, batch-blocking
    # several images per step would grow the per-step DMA block further.
    tm = max(128, min(_round_up(tm, 128), _round_up(HW, 128)))
    grid = (N, pl.cdiv(HW, tm))
    const = lambda b, j: (0, 0)

    out3 = pl.pallas_call(
        _attention_kernel,
        out_shape=jax.ShapeDtypeStruct((N, F_l, HW), x.dtype),
        grid_spec=pltpu.PrefetchScalarGridSpec(
            num_scalar_prefetch=0,
            grid=grid,
            in_specs=[
                pl.BlockSpec((None, F_g, tm), lambda b, j: (b, 0, j)),
                pl.BlockSpec((None, F_l, tm), lambda b, j: (b, 0, j)),
                pl.BlockSpec((F_int, F_g), const),
                pl.BlockSpec((F_int, F_l), const),
                pl.BlockSpec((F_int, 1), const),
                pl.BlockSpec((F_int, 1), const),
                pl.BlockSpec(memory_space=pltpu.MemorySpace.SMEM),
            ],
            out_specs=pl.BlockSpec((None, F_l, tm), lambda b, j: (b, 0, j)),
        ),
        compiler_params=pltpu.CompilerParams(
            dimension_semantics=("parallel", "parallel"),
        ),
    )(g3, x3, wgt, wxt, b_gx, wpsi_col, bpsi_arr)

    # (N, F_l, H*W) -> NCHW (free reshape).
    return out3.reshape(N, F_l, H, W)


def _reference(g, x, params, eps=1e-5):
    """Plain-JAX reference matching the PyTorch eval-mode forward."""
    N, F_g, H, W = g.shape
    _, F_l, _, _ = x.shape
    g_mat = jnp.transpose(g, (0, 2, 3, 1)).reshape(-1, F_g)
    x_mat = jnp.transpose(x, (0, 2, 3, 1)).reshape(-1, F_l)
    wg, bg = _fold_conv_bn(params["wg"], params["bg"], params["bn_g_gamma"],
                           params["bn_g_beta"], params["bn_g_mean"],
                           params["bn_g_var"], eps)
    wx, bx = _fold_conv_bn(params["wx"], params["bx"], params["bn_x_gamma"],
                           params["bn_x_beta"], params["bn_x_mean"],
                           params["bn_x_var"], eps)
    wpsi, bpsi = _fold_conv_bn(params["wpsi"], params["bpsi"],
                               params["bn_p_gamma"], params["bn_p_beta"],
                               params["bn_p_mean"], params["bn_p_var"], eps)
    s = jnp.maximum(g_mat @ wg + bg + x_mat @ wx + bx, 0.0)
    psi = jax.nn.sigmoid(s @ wpsi + bpsi)   # (M, 1)
    out = x_mat * psi
    return out.reshape(N, H, W, F_l).transpose(0, 3, 1, 2)


def make_params(key, F_g, F_l, F_int):
    ks = jax.random.split(key, 9)
    p = {
        # conv weights stored as (C_in, C_out) for matmul form of 1x1 conv
        "wg": 0.1 * jax.random.normal(ks[0], (F_g, F_int), jnp.float32),
        "bg": 0.1 * jax.random.normal(ks[1], (F_int,), jnp.float32),
        "wx": 0.1 * jax.random.normal(ks[2], (F_l, F_int), jnp.float32),
        "bx": 0.1 * jax.random.normal(ks[3], (F_int,), jnp.float32),
        "wpsi": 0.1 * jax.random.normal(ks[4], (F_int, 1), jnp.float32),
        "bpsi": 0.1 * jax.random.normal(ks[5], (1,), jnp.float32),
        # BatchNorm (inference) parameters
        "bn_g_gamma": 1.0 + 0.1 * jax.random.normal(ks[6], (F_int,), jnp.float32),
        "bn_g_beta": jnp.zeros((F_int,), jnp.float32) + 0.05,
        "bn_g_mean": jnp.zeros((F_int,), jnp.float32),
        "bn_g_var": jnp.ones((F_int,), jnp.float32),
        "bn_x_gamma": 1.0 + 0.1 * jax.random.normal(ks[7], (F_int,), jnp.float32),
        "bn_x_beta": jnp.zeros((F_int,), jnp.float32) - 0.05,
        "bn_x_mean": jnp.zeros((F_int,), jnp.float32),
        "bn_x_var": jnp.ones((F_int,), jnp.float32),
        "bn_p_gamma": jnp.ones((1,), jnp.float32) * 1.1,
        "bn_p_beta": jnp.zeros((1,), jnp.float32),
        "bn_p_mean": jnp.zeros((1,), jnp.float32),
        "bn_p_var": jnp.ones((1,), jnp.float32),
    }
    return p


if __name__ == "__main__":
    F_g, F_l, F_int = 4, 4, 32
    N, H, W = 2, 16, 16

    key = jax.random.PRNGKey(0)
    kg, kx, kp = jax.random.split(key, 3)
    g = jax.random.normal(kg, (N, F_g, H, W), jnp.float32)
    x = jax.random.normal(kx, (N, F_l, H, W), jnp.float32)
    params = make_params(kp, F_g, F_l, F_int)

    ref = _reference(g, x, params)

    # f32, small tile: (2 batch) x (2 spatial blocks) grid, exercises pipelining.
    out = jax.block_until_ready(attention_block(g, x, params, tm=128))
    assert out.shape == (N, F_l, H, W)
    if not jnp.allclose(out, ref, rtol=1e-5, atol=1e-5):
        raise AssertionError("Pallas kernel (f32, tm=128) mismatch vs reference")

    # f32, default (large) tile: one spatial block per image.
    out = jax.block_until_ready(attention_block(g, x, params))
    if not jnp.allclose(out, ref, rtol=1e-5, atol=1e-5):
        raise AssertionError("Pallas kernel (f32, default tm) mismatch vs reference")

    # Ragged spatial extent (H*W = 225, not a multiple of 128): masked writeback.
    g_r = jax.random.normal(jax.random.PRNGKey(1), (N, F_g, 15, 15), jnp.float32)
    x_r = jax.random.normal(jax.random.PRNGKey(2), (N, F_l, 15, 15), jnp.float32)
    ref_r = _reference(g_r, x_r, params)
    out_r = jax.block_until_ready(attention_block(g_r, x_r, params, tm=128))
    if not jnp.allclose(out_r, ref_r, rtol=1e-5, atol=1e-5):
        raise AssertionError("Pallas kernel (f32, ragged) mismatch vs reference")

    # bf16 HBM streams (inputs assumed bf16 upstream; output written bf16).
    out_bf16 = jax.block_until_ready(
        attention_block(g.astype(jnp.bfloat16), x.astype(jnp.bfloat16), params))
    assert out_bf16.dtype == jnp.bfloat16
    if not jnp.allclose(out_bf16.astype(jnp.float32), ref, rtol=5e-2, atol=5e-2):
        raise AssertionError("Pallas kernel (bf16 IO) mismatch vs reference")

    print("KERNEL_OK")
</pallas_src>

<mosaic_0001>
module attributes {stable_mosaic.version = 11 : i64} {
  func.func @_attention_kernel(%arg0: i32, %arg1: i32, %arg2: memref<1x4x128xf32, #tpu.memory_space<vmem>>, %arg3: memref<1x4x128xf32, #tpu.memory_space<vmem>>, %arg4: memref<32x4xf32, #tpu.memory_space<vmem>>, %arg5: memref<32x4xf32, #tpu.memory_space<vmem>>, %arg6: memref<32x1xf32, #tpu.memory_space<vmem>>, %arg7: memref<32x1xf32, #tpu.memory_space<vmem>>, %arg8: memref<1x1xf32, #tpu.memory_space<smem>>, %arg9: memref<1x4x128xf32, #tpu.memory_space<vmem>>) attributes {dimension_semantics = [#tpu.dimension_semantics<parallel>, #tpu.dimension_semantics<parallel>], iteration_bounds = array<i64: 2, 2>, scalar_prefetch = 0 : i64, scratch_operands = 0 : i64, tpu.core_type = #tpu.core_type<tc>, window_params = [{transform_indices = @transform_0, window_bounds = array<i64: 1, 4, 128>}, {transform_indices = @transform_1, window_bounds = array<i64: 1, 4, 128>}, {pipeline_mode = #tpu.pipeline_mode<synchronous>, transform_indices = @transform_2, window_bounds = array<i64: 32, 4>}, {pipeline_mode = #tpu.pipeline_mode<synchronous>, transform_indices = @transform_3, window_bounds = array<i64: 32, 4>}, {pipeline_mode = #tpu.pipeline_mode<synchronous>, transform_indices = @transform_4, window_bounds = array<i64: 32, 1>}, {pipeline_mode = #tpu.pipeline_mode<synchronous>, transform_indices = @transform_5, window_bounds = array<i64: 32, 1>}, {transform_indices = @transform_6, window_bounds = array<i64: 1, 1>}, {transform_indices = @transform_7, window_bounds = array<i64: 1, 4, 128>}]} {
    %c0 = arith.constant 0 : index
    %c0_0 = arith.constant 0 : index
    %c0_1 = arith.constant 0 : index
    %0 = vector.load %arg2[%c0, %c0_0, %c0_1] : memref<1x4x128xf32, #tpu.memory_space<vmem>>, vector<1x4x128xf32>
    %1 = vector.shape_cast %0 : vector<1x4x128xf32> to vector<4x128xf32>
    %c0_2 = arith.constant 0 : index
    %c0_3 = arith.constant 0 : index
    %c0_4 = arith.constant 0 : index
    %2 = vector.load %arg3[%c0_2, %c0_3, %c0_4] : memref<1x4x128xf32, #tpu.memory_space<vmem>>, vector<1x4x128xf32>
    %3 = vector.shape_cast %2 : vector<1x4x128xf32> to vector<4x128xf32>
    %c0_5 = arith.constant 0 : index
    %c0_6 = arith.constant 0 : index
    %4 = vector.load %arg4[%c0_5, %c0_6] : memref<32x4xf32, #tpu.memory_space<vmem>>, vector<32x4xf32>
    %cst = arith.constant dense<0.000000e+00> : vector<32x128xf32>
    %5 = tpu.matmul %4, %1, %cst {dimension_numbers = #tpu.dot_dimension_numbers<[1], [0], [0], [1], [0, 0, 1, 1], [], []>} : vector<32x4xf32>, vector<4x128xf32>, vector<32x128xf32> -> vector<32x128xf32>
    %c0_7 = arith.constant 0 : index
    %c0_8 = arith.constant 0 : index
    %6 = vector.load %arg5[%c0_7, %c0_8] : memref<32x4xf32, #tpu.memory_space<vmem>>, vector<32x4xf32>
    %cst_9 = arith.constant dense<0.000000e+00> : vector<32x128xf32>
    %7 = tpu.matmul %6, %3, %cst_9 {dimension_numbers = #tpu.dot_dimension_numbers<[1], [0], [0], [1], [0, 0, 1, 1], [], []>} : vector<32x4xf32>, vector<4x128xf32>, vector<32x128xf32> -> vector<32x128xf32>
    %8 = arith.addf %5, %7 : vector<32x128xf32>
    %c0_10 = arith.constant 0 : index
    %c0_11 = arith.constant 0 : index
    %9 = vector.load %arg6[%c0_10, %c0_11] : memref<32x1xf32, #tpu.memory_space<vmem>>, vector<32x1xf32>
    %10 = vector.broadcast %9 : vector<32x1xf32> to vector<32x128xf32>
    %11 = arith.addf %8, %10 : vector<32x128xf32>
    %cst_12 = arith.constant 0.000000e+00 : f32
    %12 = vector.broadcast %cst_12 : f32 to vector<32x128xf32>
    %13 = arith.maximumf %11, %12 : vector<32x128xf32>
    %c0_13 = arith.constant 0 : index
    %c0_14 = arith.constant 0 : index
    %14 = vector.load %arg7[%c0_13, %c0_14] : memref<32x1xf32, #tpu.memory_space<vmem>>, vector<32x1xf32>
    %15 = vector.broadcast %14 : vector<32x1xf32> to vector<32x128xf32>
    %16 = arith.mulf %13, %15 : vector<32x128xf32>
    %cst_15 = arith.constant dense<0.000000e+00> : vector<128xf32>
    %17 = vector.multi_reduction <add>, %16, %cst_15 [0] : vector<32x128xf32> to vector<128xf32>
    %18 = vector.shape_cast %17 : vector<128xf32> to vector<1x128xf32>
    %c0_16 = arith.constant 0 : index
    %c0_17 = arith.constant 0 : index
    %19 = memref.load %arg8[%c0_16, %c0_17] : memref<1x1xf32, #tpu.memory_space<smem>>
    %20 = vector.broadcast %19 : f32 to vector<1x128xf32>
    %21 = arith.addf %18, %20 : vector<1x128xf32>
    %22 = arith.negf %21 : vector<1x128xf32>
    %23 = math.exp %22 : vector<1x128xf32>
    %cst_18 = arith.constant 1.000000e+00 : f32
    %24 = vector.broadcast %cst_18 : f32 to vector<1x128xf32>
    %25 = arith.addf %24, %23 : vector<1x128xf32>
    %26 = arith.divf %24, %25 : vector<1x128xf32>
    %27 = vector.broadcast %26 : vector<1x128xf32> to vector<4x128xf32>
    %28 = arith.mulf %3, %27 : vector<4x128xf32>
    %c0_19 = arith.constant 0 : index
    %c0_20 = arith.constant 0 : index
    %c0_21 = arith.constant 0 : index
    %29 = vector.load %arg9[%c0_19, %c0_20, %c0_21] : memref<1x4x128xf32, #tpu.memory_space<vmem>>, vector<1x4x128xf32>
    %30 = vector.shape_cast %29 : vector<1x4x128xf32> to vector<4x128xf32>
    %31 = vector.shape_cast %28 : vector<4x128xf32> to vector<1x4x128xf32>
    tpu.vector_store %arg9[%c0_19, %c0_20, %c0_21], %31 {strides = array<i32>} : memref<1x4x128xf32, #tpu.memory_space<vmem>>, vector<1x4x128xf32>,
    return
  }
  func.func @transform_0(%arg0: i32, %arg1: i32) -> (i32, i32, i32) {
    %c0_i32 = arith.constant 0 : i32
    %c0_i32_0 = arith.constant 0 : i32
    return %arg0, %c0_i32, %arg1 : i32, i32, i32
  }
  func.func @transform_1(%arg0: i32, %arg1: i32) -> (i32, i32, i32) {
    %c0_i32 = arith.constant 0 : i32
    %c0_i32_0 = arith.constant 0 : i32
    return %arg0, %c0_i32, %arg1 : i32, i32, i32
  }
  func.func @transform_2(%arg0: i32, %arg1: i32) -> (i32, i32) {
    %c0_i32 = arith.constant 0 : i32
    %c0_i32_0 = arith.constant 0 : i32
    %c0_i32_1 = arith.constant 0 : i32
    return %c0_i32, %c0_i32_0 : i32, i32
  }
  func.func @transform_3(%arg0: i32, %arg1: i32) -> (i32, i32) {
    %c0_i32 = arith.constant 0 : i32
    %c0_i32_0 = arith.constant 0 : i32
    %c0_i32_1 = arith.constant 0 : i32
    return %c0_i32, %c0_i32_0 : i32, i32
  }
  func.func @transform_4(%arg0: i32, %arg1: i32) -> (i32, i32) {
    %c0_i32 = arith.constant 0 : i32
    %c0_i32_0 = arith.constant 0 : i32
    %c0_i32_1 = arith.constant 0 : i32
    return %c0_i32, %c0_i32_0 : i32, i32
  }
  func.func @transform_5(%arg0: i32, %arg1: i32) -> (i32, i32) {
    %c0_i32 = arith.constant 0 : i32
    %c0_i32_0 = arith.constant 0 : i32
    %c0_i32_1 = arith.constant 0 : i32
    return %c0_i32, %c0_i32_0 : i32, i32
  }
  func.func @transform_6(%arg0: i32, %arg1: i32) -> (i32, i32) {
    %c0_i32 = arith.constant 0 : i32
    %c0_i32_0 = arith.constant 0 : i32
    %c0_i32_1 = arith.constant 0 : i32
    return %c0_i32, %c0_i32_0 : i32, i32
  }
  func.func @transform_7(%arg0: i32, %arg1: i32) -> (i32, i32, i32) {
    %c0_i32 = arith.constant 0 : i32
    %c0_i32_0 = arith.constant 0 : i32
    return %arg0, %c0_i32, %arg1 : i32, i32, i32
  }
}

</mosaic_0001>

<llo_original>
// kernel: tpu_custom_call.1
$region0: #{tpu_custom_call.1}
  #allocation0 [shape = 'u32[]', space=smem, size = 0x4, offset = 0x4, fixed_abs, tag = 'smem constant byte address 0x4 - core index']
  #allocation1 [shape = 'u32[144,128]{1,0:T(1,128)}', space=vmem, size = 0x12000, scoped, tag = 'internal scratch']
  #allocation2 [shape = 'f32[1,1]{1,0:T(1,128)S(6)}', space=smem, size = 0x200, scoped, tag = 'scoped memory for tpu_custom_call.1']
  %s0 = inlined_call_operand.vmem [shape: f32[2,4,256], index: 0, kind: input, shape index: {}]
  %s1 = inlined_call_operand.vmem [shape: f32[2,4,256], index: 1, kind: input, shape index: {}]
  %s2 = inlined_call_operand.vmem [shape: f32[32,4], index: 2, kind: input, shape index: {}]
  %s3 = inlined_call_operand.vmem [shape: f32[32,4], index: 3, kind: input, shape index: {}]
  %s4 = inlined_call_operand.vmem [shape: f32[32,1], index: 4, kind: input, shape index: {}]
  %s5 = inlined_call_operand.vmem [shape: f32[32,1], index: 5, kind: input, shape index: {}]
  %s6 = inlined_call_operand.<no memory space> [shape: f32[1,1], index: 6, kind: input, shape index: {}]
  %s7 = inlined_call_operand.hbm [shape: f32[2,4,256], index: 7, kind: output, shape index: {}]
  %s8 = sld [smem:[#allocation0]]
  $region61: #{tpu_custom_call.1} parent=0
    _
  %s10 = ssub.s32 1, %s8
  %s11 = scalar_select 0, %s10, %s8
  %12 = sst [smem:[#allocation2]] %s6
  $region1: #{tpu_custom_call.1} parent=0
    #allocation3 [shape = 'u8[4096]{0}', space=vmem, size = 0x1000, scoped, tag = 'output window, operand 0']
    #allocation4 [shape = 's32[2]{0}', space=sflag, size = 0x8, scoped, tag = 'scoped memory for tpu_custom_call.1']
    %13 = vsyncpa [#allocation4], 0
    %s14 = scalar_lea.sflag [#allocation4], 1
    %15 = vsyncpa %s14, 0
    loop: start=0, step=1, limit=6
    $region2: #{tpu_custom_call.1} parent=1 // loop_pre_header
      _
    $region3: #{tpu_custom_call.1} parent=1 // loop_header
      %s17 = sphi 0, %s21
      %p18 = scmp.ge.s32.totalorder %s17, 6
      %s24 = sphi 0, %s36
      %s25 = sphi 0, %s32
      %s26 = sphi 0, %s24
      %s27 = sphi 0, %s25
      %s28 = sphi 0, %s26
      %s29 = sphi 0, %s27
      %s41 = sphi 0, %s43
      %s44 = sphi 0, %s41
      %s45 = sphi 0, %s44
      %s61 = sphi 0, %s45
      %s69 = sphi 0, %s71
      %s72 = sphi 0, %s69
      %s73 = sphi 0, %s72
      %s89 = sphi 0, %s73
      %s93 = sphi 0, %s93
      %s95 = sphi 0, %s93
      %s96 = sphi 0, %s95
      %s110 = sphi 0, %s96
      %s114 = sphi 0, %s114
      %s116 = sphi 0, %s114
      %s117 = sphi 0, %s116
      %s131 = sphi 0, %s117
      %s135 = sphi 0, %s135
      %s137 = sphi 0, %s135
      %s138 = sphi 0, %s137
      %s152 = sphi 0, %s138
      %s156 = sphi 0, %s156
      %s158 = sphi 0, %s156
      %s159 = sphi 0, %s158
      %s173 = sphi 0, %s159
      %s177 = sphi 0, %s177
      %s179 = sphi 0, %s177
      %s180 = sphi 0, %s179
      %s194 = sphi 0, %s180
      %s202 = sphi 0, %s204
      %s205 = sphi 0, %s202
      %s206 = sphi 0, %s205
      %s222 = sphi 0, %s206
    $region4: #{tpu_custom_call.1} parent=1 // loop_header_branch
      %20 = sbr.rel (%p18) target = $region8
    $region5: #{tpu_custom_call.1} parent=1 // loop_body
      %s22 = ssub.s32 %s17, 1
      %s23 = ssub.s32 %s17, 2
      %s30 = sadd.s32 1, %s25
      %p31 = scmp.ge.s32.totalorder %s30, 2
      %s32 = scalar_select %p31, 0, %s30
      %s33 = sadd.s32 1, %s24
      %s34 = scalar_select %p31, %s33, %s24
      %p35 = scmp.ge.s32.totalorder %s34, 2
      %s36 = scalar_select %p35, 0, %s34
      %s37 = ssub.s32 %s24, %s36
      %s38 = ssub.s32 %s25, %s32
      %s39 = sor.u32 %s37, %s38
      %p40 = scmp.eq.s32.totalorder %s39, 0
      %s42 = sadd.s32 %s41, 1
      %s43 = scalar_select %p40, %s41, %s42
      %p46 = pneg %p40
      %p47 = scmp.eq.s32.totalorder %s17, 3
      %p48 = por %p46, %p47
      %p49 = scmp.ne.s32.totalorder %s41, %s44
      %p50 = scmp.eq.s32.totalorder %s17, 0
      %p51 = por %p49, %p50
      %p52 = scmp.ne.s32.totalorder %s41, %s44
      %p53 = scmp.eq.s32.totalorder %s22, 3
      %p54 = por %p52, %p53
      %p55 = scmp.ne.s32.totalorder %s44, %s45
      %p56 = scmp.eq.s32.totalorder %s22, 0
      %p57 = por %p55, %p56
      %p58 = scmp.ne.s32.totalorder %s44, %s45
      %p59 = scmp.eq.s32.totalorder %s23, 3
      %p60 = por %p58, %p59
      %p62 = scmp.ne.s32.totalorder %s45, %s61
      %p63 = scmp.eq.s32.totalorder %s23, 0
      %p64 = por %p62, %p63
      %s65 = ssub.s32 %s24, %s36
      %s66 = ssub.s32 %s25, %s32
      %s67 = sor.u32 %s65, %s66
      %p68 = scmp.eq.s32.totalorder %s67, 0
      %s70 = sadd.s32 %s69, 1
      %s71 = scalar_select %p68, %s69, %s70
      %p74 = pneg %p68
      %p75 = scmp.eq.s32.totalorder %s17, 3
      %p76 = por %p74, %p75
      %p77 = scmp.ne.s32.totalorder %s69, %s72
      %p78 = scmp.eq.s32.totalorder %s17, 0
      %p79 = por %p77, %p78
      %p80 = scmp.ne.s32.totalorder %s69, %s72
      %p81 = scmp.eq.s32.totalorder %s22, 3
      %p82 = por %p80, %p81
      %p83 = scmp.ne.s32.totalorder %s72, %s73
      %p84 = scmp.eq.s32.totalorder %s22, 0
      %p85 = por %p83, %p84
      %p86 = scmp.ne.s32.totalorder %s72, %s73
      %p87 = scmp.eq.s32.totalorder %s23, 3
      %p88 = por %p86, %p87
      %p90 = scmp.ne.s32.totalorder %s73, %s89
      %p91 = scmp.eq.s32.totalorder %s23, 0
      %p92 = por %p90, %p91
      %s94 = sadd.s32 %s93, 1
      %p97 = scmp.eq.s32.totalorder %s17, 3
      %p98 = scmp.ne.s32.totalorder %s93, %s95
      %p99 = scmp.eq.s32.totalorder %s17, 0
      %p100 = por %p98, %p99
      %p101 = scmp.ne.s32.totalorder %s93, %s95
      %p102 = scmp.eq.s32.totalorder %s22, 3
      %p103 = por %p101, %p102
      %p104 = scmp.ne.s32.totalorder %s95, %s96
      %p105 = scmp.eq.s32.totalorder %s22, 0
      %p106 = por %p104, %p105
      %p107 = scmp.ne.s32.totalorder %s95, %s96
      %p108 = scmp.eq.s32.totalorder %s23, 3
      %p109 = por %p107, %p108
      %p111 = scmp.ne.s32.totalorder %s96, %s110
      %p112 = scmp.eq.s32.totalorder %s23, 0
      %p113 = por %p111, %p112
      %s115 = sadd.s32 %s114, 1
      %p118 = scmp.eq.s32.totalorder %s17, 3
      %p119 = scmp.ne.s32.totalorder %s114, %s116
      %p120 = scmp.eq.s32.totalorder %s17, 0
      %p121 = por %p119, %p120
      %p122 = scmp.ne.s32.totalorder %s114, %s116
      %p123 = scmp.eq.s32.totalorder %s22, 3
      %p124 = por %p122, %p123
      %p125 = scmp.ne.s32.totalorder %s116, %s117
      %p126 = scmp.eq.s32.totalorder %s22, 0
      %p127 = por %p125, %p126
      %p128 = scmp.ne.s32.totalorder %s116, %s117
      %p129 = scmp.eq.s32.totalorder %s23, 3
      %p130 = por %p128, %p129
      %p132 = scmp.ne.s32.totalorder %s117, %s131
      %p133 = scmp.eq.s32.totalorder %s23, 0
      %p134 = por %p132, %p133
      %s136 = sadd.s32 %s135, 1
      %p139 = scmp.eq.s32.totalorder %s17, 3
      %p140 = scmp.ne.s32.totalorder %s135, %s137
      %p141 = scmp.eq.s32.totalorder %s17, 0
      %p142 = por %p140, %p141
      %p143 = scmp.ne.s32.totalorder %s135, %s137
      %p144 = scmp.eq.s32.totalorder %s22, 3
      %p145 = por %p143, %p144
      %p146 = scmp.ne.s32.totalorder %s137, %s138
      %p147 = scmp.eq.s32.totalorder %s22, 0
      %p148 = por %p146, %p147
      %p149 = scmp.ne.s32.totalorder %s137, %s138
      %p150 = scmp.eq.s32.totalorder %s23, 3
      %p151 = por %p149, %p150
      %p153 = scmp.ne.s32.totalorder %s138, %s152
      %p154 = scmp.eq.s32.totalorder %s23, 0
      %p155 = por %p153, %p154
      %s157 = sadd.s32 %s156, 1
      %p160 = scmp.eq.s32.totalorder %s17, 3
      %p161 = scmp.ne.s32.totalorder %s156, %s158
      %p162 = scmp.eq.s32.totalorder %s17, 0
      %p163 = por %p161, %p162
      %p164 = scmp.ne.s32.totalorder %s156, %s158
      %p165 = scmp.eq.s32.totalorder %s22, 3
      %p166 = por %p164, %p165
      %p167 = scmp.ne.s32.totalorder %s158, %s159
      %p168 = scmp.eq.s32.totalorder %s22, 0
      %p169 = por %p167, %p168
      %p170 = scmp.ne.s32.totalorder %s158, %s159
      %p171 = scmp.eq.s32.totalorder %s23, 3
      %p172 = por %p170, %p171
      %p174 = scmp.ne.s32.totalorder %s159, %s173
      %p175 = scmp.eq.s32.totalorder %s23, 0
      %p176 = por %p174, %p175
      %s178 = sadd.s32 %s177, 1
      %p181 = scmp.eq.s32.totalorder %s17, 3
      %p182 = scmp.ne.s32.totalorder %s177, %s179
      %p183 = scmp.eq.s32.totalorder %s17, 0
      %p184 = por %p182, %p183
      %p185 = scmp.ne.s32.totalorder %s177, %s179
      %p186 = scmp.eq.s32.totalorder %s22, 3
      %p187 = por %p185, %p186
      %p188 = scmp.ne.s32.totalorder %s179, %s180
      %p189 = scmp.eq.s32.totalorder %s22, 0
      %p190 = por %p188, %p189
      %p191 = scmp.ne.s32.totalorder %s179, %s180
      %p192 = scmp.eq.s32.totalorder %s23, 3
      %p193 = por %p191, %p192
      %p195 = scmp.ne.s32.totalorder %s180, %s194
      %p196 = scmp.eq.s32.totalorder %s23, 0
      %p197 = por %p195, %p196
      %s198 = ssub.s32 %s24, %s36
      %s199 = ssub.s32 %s25, %s32
      %s200 = sor.u32 %s198, %s199
      %p201 = scmp.eq.s32.totalorder %s200, 0
      %s203 = sadd.s32 %s202, 1
      %s204 = scalar_select %p201, %s202, %s203
      %p207 = pneg %p201
      %p208 = scmp.eq.s32.totalorder %s17, 3
      %p209 = por %p207, %p208
      %p210 = scmp.ne.s32.totalorder %s202, %s205
      %p211 = scmp.eq.s32.totalorder %s17, 0
      %p212 = por %p210, %p211
      %p213 = scmp.ne.s32.totalorder %s202, %s205
      %p214 = scmp.eq.s32.totalorder %s22, 3
      %p215 = por %p213, %p214
      %p216 = scmp.ne.s32.totalorder %s205, %s206
      %p217 = scmp.eq.s32.totalorder %s22, 0
      %p218 = por %p216, %p217
      %p219 = scmp.ne.s32.totalorder %s205, %s206
      %p220 = scmp.eq.s32.totalorder %s23, 3
      %p221 = por %p219, %p220
      %p223 = scmp.ne.s32.totalorder %s206, %s222
      %p224 = scmp.eq.s32.totalorder %s23, 0
      %p225 = por %p223, %p224
      %p226 = scmp.le.s32.totalorder 1, %s17
      %p227 = scmp.lt.s32.totalorder %s17, 5
      %p228 = pnand %p226, %p227
      %p229 = pneg %p228
      // Predicated region
      $region9: #{tpu_custom_call.1} parent=5 // pred_check
        _
      $region10: #{tpu_custom_call.1} parent=5 // pred_check_branch
        %231 = sbr.rel (%p228) target = $region12
      $region11: #{tpu_custom_call.1} parent=5 // pred_region
        %s232 = ssub.s32 %s17, 1
        // Predicated region
        $region13: #{tpu_custom_call.1} parent=11 // pred_check
          %p233 = pneg %p106
        $region14: #{tpu_custom_call.1} parent=11 // pred_check_branch
          %235 = sbr.rel (%p233) target = $region16
        $region15: #{tpu_custom_call.1} parent=11 // pred_region
          _
        $region16: #{tpu_custom_call.1} parent=11 // pred_fallthru
          _
        // Predicated region
        $region17: #{tpu_custom_call.1} parent=11 // pred_check
          %p236 = pneg %p127
        $region18: #{tpu_custom_call.1} parent=11 // pred_check_branch
          %238 = sbr.rel (%p236) target = $region20
        $region19: #{tpu_custom_call.1} parent=11 // pred_region
          _
        $region20: #{tpu_custom_call.1} parent=11 // pred_fallthru
          _
        // Predicated region
        $region21: #{tpu_custom_call.1} parent=11 // pred_check
          %p239 = pneg %p148
        $region22: #{tpu_custom_call.1} parent=11 // pred_check_branch
          %241 = sbr.rel (%p239) target = $region24
        $region23: #{tpu_custom_call.1} parent=11 // pred_region
          _
        $region24: #{tpu_custom_call.1} parent=11 // pred_fallthru
          _
        // Predicated region
        $region25: #{tpu_custom_call.1} parent=11 // pred_check
          %p242 = pneg %p169
        $region26: #{tpu_custom_call.1} parent=11 // pred_check_branch
          %244 = sbr.rel (%p242) target = $region28
        $region27: #{tpu_custom_call.1} parent=11 // pred_region
          _
        $region28: #{tpu_custom_call.1} parent=11 // pred_fallthru
          _
        // Predicated region
        $region29: #{tpu_custom_call.1} parent=11 // pred_check
          %p245 = pneg %p190
        $region30: #{tpu_custom_call.1} parent=11 // pred_check_branch
          %247 = sbr.rel (%p245) target = $region32
        $region31: #{tpu_custom_call.1} parent=11 // pred_region
          _
        $region32: #{tpu_custom_call.1} parent=11 // pred_fallthru
          _
      $region12: #{tpu_custom_call.1} parent=5 // pred_fallthru
        _
      %p248 = scmp.lt.s32.totalorder %s17, 4
      // Predicated region
      $region33: #{tpu_custom_call.1} parent=5 // pred_check
        %p249 = pneg %p248
      $region34: #{tpu_custom_call.1} parent=5 // pred_check_branch
        %251 = sbr.rel (%p249) target = $region36
      $region35: #{tpu_custom_call.1} parent=5 // pred_region
        // Predicated region
        $region37: #{tpu_custom_call.1} parent=35 // pred_check
          %p252 = pneg %p51
        $region38: #{tpu_custom_call.1} parent=35 // pred_check_branch
          %254 = sbr.rel (%p252) target = $region40
        $region39: #{tpu_custom_call.1} parent=35 // pred_region
          %p255 = scmp.lt.s32.totalorder %s24, 1
          %s256 = scalar_select %p255, %s24, 1
          %p257 = scmp.lt.s32.totalorder %s25, 1
          %s258 = scalar_select %p257, %s25, 1
          %s259 = smul.addr %s256, 2
          %s260 = sadd.s32 %s258, %s259
          %s261 = smul.addr %s260, 4
          %s262 = scalar_lea.vmem %s0, %s261
        $region40: #{tpu_custom_call.1} parent=35 // pred_fallthru
          _
        // Predicated region
        $region41: #{tpu_custom_call.1} parent=35 // pred_check
          %p263 = pneg %p79
        $region42: #{tpu_custom_call.1} parent=35 // pred_check_branch
          %265 = sbr.rel (%p263) target = $region44
        $region43: #{tpu_custom_call.1} parent=35 // pred_region
          %p266 = scmp.lt.s32.totalorder %s24, 1
          %s267 = scalar_select %p266, %s24, 1
          %p268 = scmp.lt.s32.totalorder %s25, 1
          %s269 = scalar_select %p268, %s25, 1
          %s270 = smul.addr %s267, 2
          %s271 = sadd.s32 %s269, %s270
          %s272 = smul.addr %s271, 4
          %s273 = scalar_lea.vmem %s1, %s272
        $region44: #{tpu_custom_call.1} parent=35 // pred_fallthru
          _
      $region36: #{tpu_custom_call.1} parent=5 // pred_fallthru
        _
      %p274 = scmp.le.s32.totalorder 1, %s17
      %p275 = scmp.lt.s32.totalorder %s17, 5
      %p276 = pnand %p274, %p275
      %p277 = pneg %p276
      // Predicated region
      $region45: #{tpu_custom_call.1} parent=5 // pred_check
        _
      $region46: #{tpu_custom_call.1} parent=5 // pred_check_branch
        %279 = sbr.rel (%p276) target = $region48
      $region47: #{tpu_custom_call.1} parent=5 // pred_region
        %s280 = ssub.s32 %s17, 1
        %p281 = scmp.lt.s32.totalorder %s26, 1
        %s282 = scalar_select %p281, %s26, 1
        %p283 = scmp.lt.s32.totalorder %s27, 1
        %s284 = scalar_select %p283, %s27, 1
        %s285 = smul.addr %s282, 2
        %s286 = sadd.s32 %s284, %s285
        %s287 = smul.addr %s286, 4
        %s288 = scalar_lea.vmem %s0, %s287
        %p289 = pneg %p57
        %p290 = pneg %p54
        %p291 = scmp.lt.s32.totalorder %s26, 1
        %s292 = scalar_select %p291, %s26, 1
        %p293 = scmp.lt.s32.totalorder %s27, 1
        %s294 = scalar_select %p293, %s27, 1
        %s295 = smul.addr %s292, 2
        %s296 = sadd.s32 %s294, %s295
        %s297 = smul.addr %s296, 4
        %s298 = scalar_lea.vmem %s1, %s297
        %p299 = pneg %p85
        %p300 = pneg %p82
        %p301 = pneg %p106
        %p302 = pneg %p103
        %p303 = pneg %p127
        %p304 = pneg %p124
        %p305 = pneg %p148
        %p306 = pneg %p145
        %p307 = pneg %p169
        %p308 = pneg %p166
        %p309 = pneg %p190
        %p310 = pneg %p187
        %p311 = pneg %p218
        %p312 = pneg %p215
        %s313 = sand.u32 %s205, 1
        %s314 = scalar_lea.sflag [#allocation4], %s313
        %s315 = sand.u32 %s205, 1
        %s316 = smul.addr %s315, 4
        %s317 = scalar_lea.vmem [#allocation3], %s316
        %p318 = scmp.lt.s32.totalorder %s26, 1
        %s319 = scalar_select %p318, %s26, 1
        %p320 = scmp.lt.s32.totalorder %s27, 1
        %s321 = scalar_select %p320, %s27, 1
        %s322 = smul.addr %s319, 2
        %s323 = sadd.s32 %s321, %s322
        %s324 = smul.addr %s323, 4
        %s325 = scalar_lea.vmem %s0, %s324
        %p326 = scmp.lt.s32.totalorder %s26, 1
        %s327 = scalar_select %p326, %s26, 1
        %p328 = scmp.lt.s32.totalorder %s27, 1
        %s329 = scalar_select %p328, %s27, 1
        %s330 = smul.addr %s327, 2
        %s331 = sadd.s32 %s329, %s330
        %s332 = smul.addr %s331, 4
        %s333 = scalar_lea.vmem %s1, %s332
        %v334 = vld [vmem:[%s325] sm:$0xf]
        %v335 = vld [vmem:[%s333] sm:$0xf]
        %v336 = vld [vmem:[%s2] sm:$0xff]
        %v337 = vld [vmem:[%s2 + $0x8] sm:$0xff]
        %v338 = vld [vmem:[%s2 + $0x10] sm:$0xff]
        %v339 = vld [vmem:[%s2 + $0x18] sm:$0xff]
        %v340 = vld [vmem:[%s3] sm:$0xff]
        %v341 = vld [vmem:[%s3 + $0x8] sm:$0xff]
        %v342 = vld [vmem:[%s3 + $0x10] sm:$0xff]
        %v343 = vld [vmem:[%s3 + $0x18] sm:$0xff]
        %vm344 = vcmask 31744
        %v346 = vsel %vm344, %v340, 0
        %v349 = vsel %vm344, %v341, 0
        %v352 = vsel %vm344, %v342, 0
        %v355 = vsel %vm344, %v343, 0
        %vm357 = vcmask 1043456
        %v359 = vsel %vm357, %v335, 0
        %361 = vmatprep.subr.mxu0 0.0
        %362 = vmatpush1.msra.mxu0 %v359
        %363 = vmatprep.subr.mxu0 0.0
        %364 = vmatpush1.msra.mxu0 0.0
        %365 = vmatprep.subr.mxu0 0.0
        %366 = vmatpush1.msra.mxu0 0.0
        %367 = vmatprep.subr.mxu0 0.0
        %368 = vmatpush1.msra.mxu0 0.0
        %369 = vmatprep.subr.mxu0 0.0
        %370 = vmatpush1.msra.mxu0 0.0
        %371 = vmatprep.subr.mxu0 0.0
        %372 = vmatpush1.msra.mxu0 0.0
        %373 = vmatprep.subr.mxu0 0.0
        %374 = vmatpush1.msra.mxu0 0.0
        %375 = vmatprep.subr.mxu0 0.0
        %376 = vmatpush1.msra.mxu0 0.0
        %377 = vmatprep.subr.mxu0 0.0
        %378 = vmatpush1.msra.mxu0 0.0
        %379 = vmatprep.subr.mxu0 0.0
        %380 = vmatpush1.msra.mxu0 0.0
        %381 = vmatprep.subr.mxu0 0.0
        %382 = vmatpush1.msra.mxu0 0.0
        %383 = vmatprep.subr.mxu0 0.0
        %384 = vmatpush1.msra.mxu0 0.0
        %385 = vmatprep.subr.mxu0 0.0
        %386 = vmatpush1.msra.mxu0 0.0
        %387 = vmatprep.subr.mxu0 0.0
        %388 = vmatpush1.msra.mxu0 0.0
        %389 = vmatprep.subr.mxu0 0.0
        %390 = vmatpush1.msra.mxu0 0.0
        %391 = vmatprep.subr.mxu0 0.0
        %392 = vmatpush1.msra.mxu0 0.0
        %393 = vmatprep.subr.mxu0 0.0
        %394 = vmatpush1.msra.mxu0 0.0
        %395 = vmatprep.subr.mxu0 0.0
        %396 = vmatpush1.msra.mxu0 0.0
        %397 = vmatprep.subr.mxu0 0.0
        %398 = vmatpush1.msra.mxu0 0.0
        %399 = vmatprep.subr.mxu0 0.0
        %400 = vmatpush1.msra.mxu0 0.0
        %401 = vmatprep.subr.mxu0 0.0
        %402 = vmatpush1.msra.mxu0 0.0
        %403 = vmatprep.subr.mxu0 0.0
        %404 = vmatpush1.msra.mxu0 0.0
        %405 = vmatprep.subr.mxu0 0.0
        %406 = vmatpush1.msra.mxu0 0.0
        %407 = vmatprep.subr.mxu0 0.0
        %408 = vmatpush1.msra.mxu0 0.0
        %409 = vmatprep.subr.mxu0 0.0
        %410 = vmatpush1.msra.mxu0 0.0
        %411 = vmatprep.subr.mxu0 0.0
        %412 = vmatpush1.msra.mxu0 0.0
        %413 = vmatprep.subr.mxu0 0.0
        %414 = vmatpush1.msra.mxu0 0.0
        %415 = vmatprep.subr.mxu0 0.0
        %416 = vmatpush1.msra.mxu0 0.0
        %417 = vmatprep.subr.mxu0 0.0
        %418 = vmatpush1.msra.mxu0 0.0
        %419 = vmatprep.subr.mxu0 0.0
        %420 = vmatpush1.msra.mxu0 0.0
        %421 = vmatprep.subr.mxu0 0.0
        %422 = vmatpush1.msra.mxu0 0.0
        %423 = vmatprep.subr.mxu0 0.0
        %424 = vmatpush1.msra.mxu0 0.0
        %425 = vmatprep.mubr.f32.mxu0 0.0
        %426 = vmatmul.mubr.f32.gmra.mrb[0].mxu0 %v346
        %v427 = vpop.f32.mrb[0].mxu0
        %v428 = vadd.f32 0.0, %v427
        %v429 = vpop.f32.mrb[0].mxu0
        %430 = vmatprep.mubr.f32.mxu0 0.0
        %431 = vmatmul.mubr.f32.gmra.mrb[0].mxu0 %v349
        %v432 = vpop.f32.mrb[0].mxu0
        %v433 = vadd.f32 0.0, %v432
        %v434 = vpop.f32.mrb[0].mxu0
        %435 = vmatprep.mubr.f32.mxu0 0.0
        %436 = vmatmul.mubr.f32.gmra.mrb[0].mxu0 %v352
        %v437 = vpop.f32.mrb[0].mxu0
        %v438 = vadd.f32 0.0, %v437
        %v439 = vpop.f32.mrb[0].mxu0
        %440 = vmatprep.mubr.f32.mxu0 0.0
        %441 = vmatmul.mubr.f32.gmra.mrb[0].mxu0 %v355
        %v442 = vpop.f32.mrb[0].mxu0
        %v443 = vadd.f32 0.0, %v442
        %v444 = vpop.f32.mrb[0].mxu0
        %445 = vdwg.mxu0
        %v447 = vsel %vm344, %v336, 0
        %v450 = vsel %vm344, %v337, 0
        %v453 = vsel %vm344, %v338, 0
        %v456 = vsel %vm344, %v339, 0
        %v459 = vsel %vm357, %v334, 0
        %461 = vmatprep.subr.mxu0 0.0
        %462 = vmatpush1.msra.mxu0 %v459
        %463 = vmatprep.subr.mxu0 0.0
        %464 = vmatpush1.msra.mxu0 0.0
        %465 = vmatprep.subr.mxu0 0.0
        %466 = vmatpush1.msra.mxu0 0.0
        %467 = vmatprep.subr.mxu0 0.0
        %468 = vmatpush1.msra.mxu0 0.0
        %469 = vmatprep.subr.mxu0 0.0
        %470 = vmatpush1.msra.mxu0 0.0
        %471 = vmatprep.subr.mxu0 0.0
        %472 = vmatpush1.msra.mxu0 0.0
        %473 = vmatprep.subr.mxu0 0.0
        %474 = vmatpush1.msra.mxu0 0.0
        %475 = vmatprep.subr.mxu0 0.0
        %476 = vmatpush1.msra.mxu0 0.0
        %477 = vmatprep.subr.mxu0 0.0
        %478 = vmatpush1.msra.mxu0 0.0
        %479 = vmatprep.subr.mxu0 0.0
        %480 = vmatpush1.msra.mxu0 0.0
        %481 = vmatprep.subr.mxu0 0.0
        %482 = vmatpush1.msra.mxu0 0.0
        %483 = vmatprep.subr.mxu0 0.0
        %484 = vmatpush1.msra.mxu0 0.0
        %485 = vmatprep.subr.mxu0 0.0
        %486 = vmatpush1.msra.mxu0 0.0
        %487 = vmatprep.subr.mxu0 0.0
        %488 = vmatpush1.msra.mxu0 0.0
        %489 = vmatprep.subr.mxu0 0.0
        %490 = vmatpush1.msra.mxu0 0.0
        %491 = vmatprep.subr.mxu0 0.0
        %492 = vmatpush1.msra.mxu0 0.0
        %493 = vmatprep.subr.mxu0 0.0
        %494 = vmatpush1.msra.mxu0 0.0
        %495 = vmatprep.subr.mxu0 0.0
        %496 = vmatpush1.msra.mxu0 0.0
        %497 = vmatprep.subr.mxu0 0.0
        %498 = vmatpush1.msra.mxu0 0.0
        %499 = vmatprep.subr.mxu0 0.0
        %500 = vmatpush1.msra.mxu0 0.0
        %501 = vmatprep.subr.mxu0 0.0
        %502 = vmatpush1.msra.mxu0 0.0
        %503 = vmatprep.subr.mxu0 0.0
        %504 = vmatpush1.msra.mxu0 0.0
        %505 = vmatprep.subr.mxu0 0.0
        %506 = vmatpush1.msra.mxu0 0.0
        %507 = vmatprep.subr.mxu0 0.0
        %508 = vmatpush1.msra.mxu0 0.0
        %509 = vmatprep.subr.mxu0 0.0
        %510 = vmatpush1.msra.mxu0 0.0
        %511 = vmatprep.subr.mxu0 0.0
        %512 = vmatpush1.msra.mxu0 0.0
        %513 = vmatprep.subr.mxu0 0.0
        %514 = vmatpush1.msra.mxu0 0.0
        %515 = vmatprep.subr.mxu0 0.0
        %516 = vmatpush1.msra.mxu0 0.0
        %517 = vmatprep.subr.mxu0 0.0
        %518 = vmatpush1.msra.mxu0 0.0
        %519 = vmatprep.subr.mxu0 0.0
        %520 = vmatpush1.msra.mxu0 0.0
        %521 = vmatprep.subr.mxu0 0.0
        %522 = vmatpush1.msra.mxu0 0.0
        %523 = vmatprep.subr.mxu0 0.0
        %524 = vmatpush1.msra.mxu0 0.0
        %525 = vmatprep.mubr.f32.mxu0 0.0
        %526 = vmatmul.mubr.f32.gmra.mrb[0].mxu0 %v447
        %v527 = vpop.f32.mrb[0].mxu0
        %v528 = vadd.f32 %v428, %v527
        %v529 = vpop.f32.mrb[0].mxu0
        %530 = vmatprep.mubr.f32.mxu0 0.0
        %531 = vmatmul.mubr.f32.gmra.mrb[0].mxu0 %v450
        %v532 = vpop.f32.mrb[0].mxu0
        %v533 = vadd.f32 %v433, %v532
        %v534 = vpop.f32.mrb[0].mxu0
        %535 = vmatprep.mubr.f32.mxu0 0.0
        %536 = vmatmul.mubr.f32.gmra.mrb[0].mxu0 %v453
        %v537 = vpop.f32.mrb[0].mxu0
        %v538 = vadd.f32 %v438, %v537
        %v539 = vpop.f32.mrb[0].mxu0
        %540 = vmatprep.mubr.f32.mxu0 0.0
        %541 = vmatmul.mubr.f32.gmra.mrb[0].mxu0 %v456
        %v542 = vpop.f32.mrb[0].mxu0
        %v543 = vadd.f32 %v443, %v542
        %v544 = vpop.f32.mrb[0].mxu0
        %545 = vdwg.mxu0
        %v546 = vld [vmem:[%s4] sm:$0xff]
        %v547 = vld [vmem:[%s4 + $0x8] sm:$0xff]
        %v548 = vld [vmem:[%s4 + $0x10] sm:$0xff]
        %v549 = vld [vmem:[%s4 + $0x18] sm:$0xff]
        %551 = vset.pattern.permute.xlu0 0
        %552 = vperm.xlu0 %551, %v546
        %v553 = vpop.permute.xlu0 %552
        %556 = vset.pattern.permute.xlu0 0
        %557 = vperm.xlu0 %556, %v547
        %v558 = vpop.permute.xlu0 %557
        %561 = vset.pattern.permute.xlu0 0
        %562 = vperm.xlu0 %561, %v548
        %v563 = vpop.permute.xlu0 %562
        %566 = vset.pattern.permute.xlu0 0
        %567 = vperm.xlu0 %566, %v549
        %v568 = vpop.permute.xlu0 %567
        %v570 = vadd.f32 %v528, %v553
        %v571 = vadd.f32 %v533, %v558
        %v572 = vadd.f32 %v538, %v563
        %v573 = vadd.f32 %v543, %v568
        %v574 = vmax.f32 %v570, 0.0
        %v575 = vmax.f32 %v571, 0.0
        %v576 = vmax.f32 %v572, 0.0
        %v577 = vmax.f32 %v573, 0.0
        %v578 = vld [vmem:[%s5] sm:$0xff]
        %v579 = vld [vmem:[%s5 + $0x8] sm:$0xff]
        %v580 = vld [vmem:[%s5 + $0x10] sm:$0xff]
        %v581 = vld [vmem:[%s5 + $0x18] sm:$0xff]
        %583 = vset.pattern.permute.xlu0 0
        %584 = vperm.xlu0 %583, %v578
        %v585 = vpop.permute.xlu0 %584
        %588 = vset.pattern.permute.xlu0 0
        %589 = vperm.xlu0 %588, %v579
        %v590 = vpop.permute.xlu0 %589
        %593 = vset.pattern.permute.xlu0 0
        %594 = vperm.xlu0 %593, %v580
        %v595 = vpop.permute.xlu0 %594
        %598 = vset.pattern.permute.xlu0 0
        %599 = vperm.xlu0 %598, %v581
        %v600 = vpop.permute.xlu0 %599
        %v602 = vmul.f32 %v574, %v585
        %v603 = vmul.f32 %v575, %v590
        %v604 = vmul.f32 %v576, %v595
        %v605 = vmul.f32 %v577, %v600
        %v606 = vadd.f32 %v602, %v603
        %v607 = vadd.f32 %v606, %v604
        %v608 = vadd.f32 %v607, %v605
        %v609 = vrot.slane %v608, 4
        %v610 = vadd.f32 %v608, %v609
        %v611 = vrot.slane %v610, 2
        %v612 = vadd.f32 %v610, %v611
        %v613 = vrot.slane %v612, 1
        %v614 = vadd.f32 %v612, %v613
        %s615 = sld [smem:[#allocation2]]
        %v616 = vstv %s615
        %v617 = vadd.f32 %v614, %v616
        %v618 = vxor.u32 %v617, 2147483648
        %v619 = vmul.f32 %v618, 1.442695
        %v620 = vpow.pop %v619
        %v621 = vadd.f32 %v620, 1.0
        %v622 = vrcp.pop %v621
        %v623 = vmul.f32 1.0, %v622
        %v624 = vmul.f32 %v335, %v623
        %625 = vst [vmem:[%s317] sm:$0xf] %v624
        %s626 = sand.u32 %s205, 1
        %s627 = scalar_lea.sflag [#allocation4], %s626
        %s628 = sand.u32 %s205, 1
        %s629 = smul.addr %s628, 4
        %s630 = scalar_lea.vmem [#allocation3], %s629
        // Predicated region
        $region49: #{tpu_custom_call.1} parent=47 // pred_check
          %p631 = pneg %p215
        $region50: #{tpu_custom_call.1} parent=47 // pred_check_branch
          %633 = sbr.rel (%p631) target = $region52
        $region51: #{tpu_custom_call.1} parent=47 // pred_region
          %s635 = ssub.s32 64, 64
          %636 = vsyncadd %s627, %s635
          %s637 = smul.addr %s26, 2
          %s638 = sadd.s32 %s27, %s637
          %s639 = smul.addr %s638, 64
          %s640 = scalar_lea.hbm %s7, %s639
          %s642 = sshll.u32 %s630, 4
          %s643 = int_to_ptr.vmem [resolvable:$true] %s642
          %645 = dma.vmem_to_hbm [thread:$0]  %s643, 64, %s640, %s627
        $region52: #{tpu_custom_call.1} parent=47 // pred_fallthru
          _
      $region48: #{tpu_custom_call.1} parent=5 // pred_fallthru
        _
      %p646 = scmp.le.s32.totalorder 2, %s17
      // Predicated region
      $region53: #{tpu_custom_call.1} parent=5 // pred_check
        %p647 = pneg %p646
      $region54: #{tpu_custom_call.1} parent=5 // pred_check_branch
        %649 = sbr.rel (%p647) target = $region56
      $region55: #{tpu_custom_call.1} parent=5 // pred_region
        %s650 = ssub.s32 %s17, 2
        // Predicated region
        $region57: #{tpu_custom_call.1} parent=55 // pred_check
          %p651 = pneg %p221
        $region58: #{tpu_custom_call.1} parent=55 // pred_check_branch
          %653 = sbr.rel (%p651) target = $region60
        $region59: #{tpu_custom_call.1} parent=55 // pred_region
          %s654 = sand.u32 %s206, 1
          %s655 = scalar_lea.sflag [#allocation4], %s654
          %s656 = sand.u32 %s206, 1
          %s657 = smul.addr %s656, 4
          %s658 = scalar_lea.vmem [#allocation3], %s657
          %659 = dma.done %s655, 64
        $region60: #{tpu_custom_call.1} parent=55 // pred_fallthru
          _
      $region56: #{tpu_custom_call.1} parent=5 // pred_fallthru
        _
    $region6: #{tpu_custom_call.1} parent=1 // loop_footer
      %s21 = sadd.s32 1, %s17
    $region7: #{tpu_custom_call.1} parent=1 // loop_footer_branch
      %16 = sbr.rel target = $region3
    $region8: #{tpu_custom_call.1} parent=1 // loop_exit
      _
    %660 = vsyncpa [#allocation4], 1
    %s661 = scalar_lea.sflag [#allocation4], 1
    %662 = vsyncpa %s661, 1

</llo_original>
